<compile_context>
chip_gen: v6e
topology: v6e:2x2x1
jax: 0.10.0
libtpu: 0.0.40
codegen_flags: <defaults>
</compile_context>

<pallas_src>
import functools

import jax
import jax.numpy as jnp
from jax.experimental import pallas as pl
from jax.experimental.pallas import tpu as pltpu


def _round_up(x, m):
    return ((x + m - 1) // m) * m


def _label_smooth_ce_kernel(pred_ref, label_ref, out_ref, *,
                            smoothing, total_n, tiles_per_core):
    p = pl.program_id(0)        # parallel axis (per-TensorCore partial)
    i = pl.program_id(1)        # arbitrary (reduction) axis

    @pl.when(i == 0)
    def _():
        out_ref[...] = jnp.zeros_like(out_ref)

    pred = pred_ref[...].astype(jnp.float32)             # (TILE_N, C)
    tn, c = pred.shape

    # log-sum-exp (numerically stable); only a (TILE_N, 1) log.
    m = jnp.max(pred, axis=1, keepdims=True)              # (TILE_N, 1)
    lse = m + jnp.log(jnp.sum(jnp.exp(pred - m), axis=1, keepdims=True))

    # Fused smoothed-CE: loss_row = lse - sum_c(pred[c] * w[c]),
    #   w[c] = smoothing/C + (1-smoothing) * [c == label].
    labels = label_ref[...]                                # (TILE_N, 1) int32
    class_ids = jax.lax.broadcasted_iota(jnp.int32, (tn, c), 1)
    uni = smoothing / c
    w = jnp.where(class_ids == labels, (1.0 - smoothing) + uni, uni)
    weighted = jnp.sum(pred * w, axis=1, keepdims=True)    # (TILE_N, 1)
    per_row = lse - weighted

    # Mask rows added by padding (N % TILE_N != 0 / uneven core split).
    row0 = (p * tiles_per_core + i) * tn
    row_ids = row0 + jax.lax.broadcasted_iota(jnp.int32, (tn, 1), 0)
    per_row = jnp.where(row_ids < total_n, per_row, 0.0)

    # Fold the 1/N mean into the partial sum; accumulate into the resident
    # output block directly (no scratch needed).
    out_ref[...] += jnp.sum(per_row, keepdims=True) * (1.0 / total_n)


def label_smooth_ce_loss(pred, label, smoothing=0.1, tile_n=None):
    """pred: (N, C) float logits (f32 or bf16); label: (N,) int class ids.
    Returns scalar f32: mean over N of sum_C(-log softmax * smoothed one-hot).
    """
    n, c = pred.shape
    in_bytes = max(jnp.dtype(pred.dtype).itemsize, 2)
    c_pad = _round_up(c, 128)                 # lane padding of the class dim

    # Generation-aware VMEM budgeting.
    try:
        vmem_cap = int(pltpu.get_tpu_info().vmem_capacity_bytes)
    except Exception:                         # conservative fallback
        vmem_cap = 64 * 1024 * 1024
    small_vmem = vmem_cap <= 64 * 1024 * 1024       # e.g. v7x (64 MiB / TC)
    per_block_target = (6 if small_vmem else 8) * 1024 * 1024
    vmem_limit = (48 if small_vmem else 100) * 1024 * 1024

    # Per-row VMEM cost: double-buffered pred block (lane-padded C) +
    # double-buffered lane-padded (TILE,1) int32 label block + ~3 f32
    # (TILE, c_pad) in-kernel temporaries (f32 cast, weights, product).
    bytes_per_row = 2 * c_pad * in_bytes + 2 * 128 * 4 + 3 * c_pad * 4
    budget_rows = max(8, (((vmem_limit - 4 * 1024 * 1024) // bytes_per_row) // 8) * 8)
    target_rows = max(8, ((per_block_target // (c_pad * in_bytes)) // 8) * 8)

    n_pad8 = _round_up(n, 8)
    tn = min(budget_rows, target_rows, n_pad8)
    if tile_n is not None:
        tn = min(tn, _round_up(int(tile_n), 8))
    tn = max(8, (tn // 8) * 8)

    # Huge-C escape hatch: if even the 8-row floor exceeds the limit, raise the
    # limit toward (but below) physical VMEM.
    est = tn * bytes_per_row + 2 * 1024 * 1024
    vmem_limit = min(max(vmem_limit, est),
                     max(vmem_cap - 8 * 1024 * 1024, 32 * 1024 * 1024))

    # Split the batch across (up to) 2 TensorCores via a leading parallel axis.
    n_tiles = pl.cdiv(n, tn)
    num_par = 2 if n_tiles >= 2 else 1
    tiles_per_core = pl.cdiv(n_tiles, num_par)
    n_pad = num_par * tiles_per_core * tn

    pred_p = pred if n_pad == n else jnp.pad(pred, ((0, n_pad - n), (0, 0)))
    label2d = label.astype(jnp.int32).reshape(n, 1)
    label_p = label2d if n_pad == n else jnp.pad(label2d, ((0, n_pad - n), (0, 0)))

    kernel = functools.partial(
        _label_smooth_ce_kernel, smoothing=float(smoothing), total_n=n,
        tiles_per_core=tiles_per_core)

    out = pl.pallas_call(
        kernel,
        out_shape=jax.ShapeDtypeStruct((num_par, 1), jnp.float32),
        grid_spec=pltpu.PrefetchScalarGridSpec(
            num_scalar_prefetch=0,
            grid=(num_par, tiles_per_core),
            in_specs=[
                pl.BlockSpec((tn, c), lambda p, i: (p * tiles_per_core + i, 0)),
                pl.BlockSpec((tn, 1), lambda p, i: (p * tiles_per_core + i, 0)),
            ],
            out_specs=pl.BlockSpec((1, 1), lambda p, i: (p, 0)),
        ),
        compiler_params=pltpu.CompilerParams(
            dimension_semantics=("parallel", "arbitrary"),
            vmem_limit_bytes=int(vmem_limit),
        ),
    )(pred_p, label_p)
    return jnp.sum(out)           # combine the per-core partial means


def _reference(pred, label, smoothing=0.1):
    p = jax.nn.softmax(pred.astype(jnp.float32), axis=1)
    one_hot = jax.nn.one_hot(label, pred.shape[1], dtype=jnp.float32)
    smoothed = (1.0 - smoothing) * one_hot + smoothing / pred.shape[1]
    loss = (-jnp.log(p) * smoothed).sum(axis=1)
    return loss.mean()


# TODO(synk): optional MXU offload of the C-axis reduction (pred @ ones) for
# bf16-VALU-bound cases on v6e/v7x not implemented; profile first.

if __name__ == "__main__":
    key = jax.random.PRNGKey(0)
    k1, k2, k3, k4 = jax.random.split(key, 4)

    # Small case consistent with the module: batch of logits over classes.
    N, C = 8, 32
    pred = jax.random.normal(k1, (N, C), dtype=jnp.float32)
    label = jax.random.randint(k2, (N,), 0, C, dtype=jnp.int32)
    loss = label_smooth_ce_loss(pred, label, smoothing=0.1)
    jax.block_until_ready(loss)
    ref = _reference(pred, label, smoothing=0.1)
    assert jnp.allclose(loss, ref, atol=1e-5, rtol=1e-5), (loss, ref)

    # Ragged batch: exercises N-tiling, the 2-core split, accumulation, and
    # padded-row masking (tile_n=128 -> 3 tiles -> 2 tiles/core, 512 padded rows).
    N2, C2 = 300, 128
    pred2 = jax.random.normal(k3, (N2, C2), dtype=jnp.float32)
    label2 = jax.random.randint(k4, (N2,), 0, C2, dtype=jnp.int32)
    loss2 = label_smooth_ce_loss(pred2, label2, smoothing=0.1, tile_n=128)
    jax.block_until_ready(loss2)
    ref2 = _reference(pred2, label2, smoothing=0.1)
    assert jnp.allclose(loss2, ref2, atol=1e-5, rtol=1e-5), (loss2, ref2)

    # bf16 logits path (cast to f32 in-kernel).
    pred3 = pred2.astype(jnp.bfloat16)
    loss3 = label_smooth_ce_loss(pred3, label2, smoothing=0.1)
    jax.block_until_ready(loss3)
    ref3 = _reference(pred3, label2, smoothing=0.1)
    assert jnp.allclose(loss3, ref3, atol=1e-4, rtol=1e-4), (loss3, ref3)

    print("KERNEL_OK")
</pallas_src>

<mosaic_0001>
module attributes {stable_mosaic.version = 11 : i64} {
  func.func @_label_smooth_ce_kernel(%arg0: i32, %arg1: i32, %arg2: memref<8x32xf32, #tpu.memory_space<vmem>>, %arg3: memref<8x1xi32, #tpu.memory_space<vmem>>, %arg4: memref<1x1xf32, #tpu.memory_space<vmem>>) attributes {dimension_semantics = [#tpu.dimension_semantics<parallel>, #tpu.dimension_semantics<arbitrary>], iteration_bounds = array<i64: 1, 1>, scalar_prefetch = 0 : i64, scratch_operands = 0 : i64, tpu.core_type = #tpu.core_type<tc>, window_params = [{transform_indices = @transform_0, window_bounds = array<i64: 8, 32>}, {transform_indices = @transform_1, window_bounds = array<i64: 8, 1>}, {transform_indices = @transform_2, window_bounds = array<i64: 1, 1>}]} {
    %c0_i32 = arith.constant 0 : i32
    %0 = arith.cmpi eq, %arg1, %c0_i32 : i32
    %1 = arith.extui %0 : i1 to i32
    %c0_i32_0 = arith.constant 0 : i32
    %2 = arith.cmpi ne, %1, %c0_i32_0 : i32
    scf.if %2 {
      %cst_16 = arith.constant 0.000000e+00 : f32
      %44 = vector.broadcast %cst_16 : f32 to vector<1x1xf32>
      %c0_17 = arith.constant 0 : index
      %c0_18 = arith.constant 0 : index
      %45 = vector.load %arg4[%c0_17, %c0_18] : memref<1x1xf32, #tpu.memory_space<vmem>>, vector<1x1xf32>
      tpu.vector_store %arg4[%c0_17, %c0_18], %44 {strides = array<i32>} : memref<1x1xf32, #tpu.memory_space<vmem>>, vector<1x1xf32>,
    } else {
    }
    %c0 = arith.constant 0 : index
    %c0_1 = arith.constant 0 : index
    %3 = vector.load %arg2[%c0, %c0_1] : memref<8x32xf32, #tpu.memory_space<vmem>>, vector<8x32xf32>
    %cst = arith.constant dense<0xFF800000> : vector<8xf32>
    %4 = vector.multi_reduction <maximumf>, %3, %cst [1] : vector<8x32xf32> to vector<8xf32>
    %5 = vector.shape_cast %4 : vector<8xf32> to vector<8x1xf32>
    %6 = vector.broadcast %5 : vector<8x1xf32> to vector<8x32xf32>
    %7 = arith.subf %3, %6 : vector<8x32xf32>
    %8 = math.exp %7 : vector<8x32xf32>
    %cst_2 = arith.constant dense<0.000000e+00> : vector<8xf32>
    %9 = vector.multi_reduction <add>, %8, %cst_2 [1] : vector<8x32xf32> to vector<8xf32>
    %10 = vector.shape_cast %9 : vector<8xf32> to vector<8x1xf32>
    %11 = math.log %10 : vector<8x1xf32>
    %12 = arith.addf %5, %11 : vector<8x1xf32>
    %c0_3 = arith.constant 0 : index
    %c0_4 = arith.constant 0 : index
    %13 = vector.load %arg3[%c0_3, %c0_4] : memref<8x1xi32, #tpu.memory_space<vmem>>, vector<8x1xi32>
    %14 = tpu.iota {dimensions = array<i32: 1>} : vector<8x32xi32>
    %15 = vector.broadcast %13 : vector<8x1xi32> to vector<8x32xi32>
    %16 = arith.cmpi eq, %14, %15 : vector<8x32xi32>
    %cst_5 = arith.constant 0.903124988 : f32
    %cst_6 = arith.constant 3.125000e-03 : f32
    %17 = vector.broadcast %cst_5 : f32 to vector<8x32xf32>
    %18 = vector.broadcast %cst_6 : f32 to vector<8x32xf32>
    %19 = arith.select %16, %17, %18 : vector<8x32xi1>, vector<8x32xf32>
    %20 = arith.mulf %3, %19 : vector<8x32xf32>
    %cst_7 = arith.constant dense<0.000000e+00> : vector<8xf32>
    %21 = vector.multi_reduction <add>, %20, %cst_7 [1] : vector<8x32xf32> to vector<8xf32>
    %22 = vector.shape_cast %21 : vector<8xf32> to vector<8x1xf32>
    %23 = arith.subf %12, %22 : vector<8x1xf32>
    %c1_i32 = arith.constant 1 : i32
    %24 = arith.muli %arg0, %c1_i32 : i32
    %25 = arith.addi %24, %arg1 : i32
    %c8_i32 = arith.constant 8 : i32
    %26 = arith.muli %25, %c8_i32 : i32
    %27 = tpu.iota {dimensions = array<i32: 0>} : vector<8x1xi32>
    %28 = vector.broadcast %26 : i32 to vector<8x1xi32>
    %29 = arith.addi %28, %27 : vector<8x1xi32>
    %c8_i32_8 = arith.constant 8 : i32
    %30 = vector.broadcast %c8_i32_8 : i32 to vector<8x1xi32>
    %31 = arith.cmpi slt, %29, %30 : vector<8x1xi32>
    %cst_9 = arith.constant 0.000000e+00 : f32
    %32 = vector.broadcast %cst_9 : f32 to vector<8x1xf32>
    %33 = arith.select %31, %23, %32 : vector<8x1xi1>, vector<8x1xf32>
    %c0_10 = arith.constant 0 : index
    %c0_11 = arith.constant 0 : index
    %34 = vector.load %arg4[%c0_10, %c0_11] : memref<1x1xf32, #tpu.memory_space<vmem>>, vector<1x1xf32>
    %35 = vector.shape_cast %33 : vector<8x1xf32> to vector<1x8x1xf32>
    %cst_12 = arith.constant dense<0.000000e+00> : vector<1xf32>
    %36 = vector.multi_reduction <add>, %35, %cst_12 [1, 2] : vector<1x8x1xf32> to vector<1xf32>
    %37 = vector.shape_cast %36 : vector<1xf32> to vector<1x1x1xf32>
    %38 = vector.extract %37[0, 0, 0] : f32 from vector<1x1x1xf32>
    %39 = vector.broadcast %38 : f32 to vector<1x1xf32>
    %cst_13 = arith.constant 1.250000e-01 : f32
    %40 = vector.broadcast %cst_13 : f32 to vector<1x1xf32>
    %41 = arith.mulf %39, %40 : vector<1x1xf32>
    %42 = arith.addf %34, %41 : vector<1x1xf32>
    %c0_14 = arith.constant 0 : index
    %c0_15 = arith.constant 0 : index
    %43 = vector.load %arg4[%c0_14, %c0_15] : memref<1x1xf32, #tpu.memory_space<vmem>>, vector<1x1xf32>
    tpu.vector_store %arg4[%c0_14, %c0_15], %42 {strides = array<i32>} : memref<1x1xf32, #tpu.memory_space<vmem>>, vector<1x1xf32>,
    return
  }
  func.func @transform_0(%arg0: i32, %arg1: i32) -> (i32, i32) {
    %c1_i32 = arith.constant 1 : i32
    %0 = arith.muli %arg0, %c1_i32 : i32
    %1 = arith.addi %0, %arg1 : i32
    %c0_i32 = arith.constant 0 : i32
    %c0_i32_0 = arith.constant 0 : i32
    return %1, %c0_i32 : i32, i32
  }
  func.func @transform_1(%arg0: i32, %arg1: i32) -> (i32, i32) {
    %c1_i32 = arith.constant 1 : i32
    %0 = arith.muli %arg0, %c1_i32 : i32
    %1 = arith.addi %0, %arg1 : i32
    %c0_i32 = arith.constant 0 : i32
    %c0_i32_0 = arith.constant 0 : i32
    return %1, %c0_i32 : i32, i32
  }
  func.func @transform_2(%arg0: i32, %arg1: i32) -> (i32, i32) {
    %c0_i32 = arith.constant 0 : i32
    %c0_i32_0 = arith.constant 0 : i32
    return %arg0, %c0_i32 : i32, i32
  }
}

</mosaic_0001>

<llo_original>
// kernel: tpu_custom_call.1
$region0: #{tpu_custom_call.1}
  #allocation0 [shape = 'u32[]', space=smem, size = 0x4, offset = 0x4, fixed_abs, tag = 'smem constant byte address 0x4 - core index']
  #allocation1 [shape = 'u32[144,128]{1,0:T(1,128)}', space=vmem, size = 0x12000, scoped, tag = 'internal scratch']
  %s0 = inlined_call_operand.vmem [shape: f32[8,32], index: 0, kind: input, shape index: {}]
  %s1 = inlined_call_operand.vmem [shape: s32[8,1], index: 1, kind: input, shape index: {}]
  %s2 = inlined_call_operand.hbm [shape: f32[1,1], index: 2, kind: output, shape index: {}]
  %s3 = sld [smem:[#allocation0]]
  $region22: #{tpu_custom_call.1} parent=0
    _
  %s5 = ssub.s32 1, %s3
  %s6 = scalar_select 0, %s5, %s3
  $region1: #{tpu_custom_call.1} parent=0
    #allocation2 [shape = 'u8[512]{0}', space=vmem, size = 0x400, scoped, tag = 'output window, operand 0, single buffered']
    #allocation3 [shape = 's32[1]{0}', space=sflag, size = 0x4, scoped, tag = 'scoped memory for tpu_custom_call.1']
    %7 = vsyncpa [#allocation3], 0
    // Predicated region
    $region2: #{tpu_custom_call.1} parent=1 // pred_check
      _
    $region3: #{tpu_custom_call.1} parent=1 // pred_check_branch
      %9 = sbr.rel (0) target = $region5
    $region4: #{tpu_custom_call.1} parent=1 // pred_region
      %s10 = sadd.s32 0, 0
      %p11 = scmp.lt.s32.totalorder %s10, 0
      %s12 = scalar_select %p11, %s10, 0
      %s13 = smul.addr %s12, 8
      %s14 = scalar_lea.vmem %s0, %s13
      %s15 = sadd.s32 0, 0
    $region5: #{tpu_custom_call.1} parent=1 // pred_fallthru
      _
    // Predicated region
    $region6: #{tpu_custom_call.1} parent=1 // pred_check
      _
    $region7: #{tpu_custom_call.1} parent=1 // pred_check_branch
      %17 = sbr.rel (0) target = $region9
    $region8: #{tpu_custom_call.1} parent=1 // pred_region
      %s18 = sadd.s32 0, 0
      %p19 = scmp.lt.s32.totalorder %s18, 0
      %s20 = scalar_select %p19, %s18, 0
      %s21 = smul.addr %s20, 8
      %s22 = scalar_lea.vmem %s1, %s21
      %s23 = sadd.s32 0, 0
    $region9: #{tpu_custom_call.1} parent=1 // pred_fallthru
      _
    %s24 = sadd.s32 0, 0
    %p25 = scmp.lt.s32.totalorder %s24, 0
    %s26 = scalar_select %p25, %s24, 0
    %s27 = smul.addr %s26, 8
    %s28 = scalar_lea.vmem %s0, %s27
    %s29 = sadd.s32 0, 0
    %p30 = scmp.lt.s32.totalorder %s29, 0
    %s31 = scalar_select %p30, %s29, 0
    %s32 = smul.addr %s31, 8
    %s33 = scalar_lea.vmem %s1, %s32
    %s34 = sadd.s32 0, 0
    %p35 = scmp.lt.s32.totalorder %s34, 0
    %s36 = scalar_select %p35, %s34, 0
    %s37 = smul.addr %s36, 8
    %s38 = scalar_lea.vmem %s0, %s37
    %s39 = sadd.s32 0, 0
    %s40 = sadd.s32 0, 0
    %p41 = scmp.lt.s32.totalorder %s40, 0
    %s42 = scalar_select %p41, %s40, 0
    %s43 = smul.addr %s42, 8
    %s44 = scalar_lea.vmem %s1, %s43
    %s45 = sadd.s32 0, 0
    %p46 = scmp.eq.s32.totalorder 0, 0
    // Predicated region
    $region10: #{tpu_custom_call.1} parent=1 // pred_check
      %p47 = pneg %p46
    $region11: #{tpu_custom_call.1} parent=1 // pred_check_branch
      %49 = sbr.rel (%p47) target = $region13
    $region12: #{tpu_custom_call.1} parent=1 // pred_region
      %vm50 = vcmask 0
      %51 = vst.msk [vmem:[#allocation2] sm:$0x1] %vm50, 0.0
    $region13: #{tpu_custom_call.1} parent=1 // pred_fallthru
      _
    %v52 = vld [vmem:[%s38] sm:$0xff]
    %vm53 = vcmask 261120
    %v54 = vsel %vm53, %v52, -inf
    %55 = vmax.xlane.f32.xlu0 %v54
    %v56 = vpop.xlane.xlu0 %55
    %v57 = vsub.f32 %v52, %v56
    %v58 = vmul.f32 %v57, 1.442695
    %v59 = vpow.pop %v58
    %v60 = vsel %vm53, %v59, 0.0
    %61 = vadd.xlane.f32.xlu0 %v60
    %v62 = vpop.xlane.xlu0 %61
    %v63 = vlog2.pop %v62
    %v64 = vmul.f32 %v63, 0.6931472
    %v65 = vadd.f32 %v56, %v64
    %v66 = vld [vmem:[%s44] sm:$0xff]
    %v67 = vlaneseq
    %v68 = vand.u32 %v67, 127
    %69 = vset.pattern.permute.xlu0 0
    %70 = vperm.xlu0 %69, %v66
    %v71 = vpop.permute.xlu0 %70
    %vm72 = vcmp.eq.s32.totalorder %v68, %v71
    %v73 = vsel %vm72, 0.903125, 0.003125
    %v74 = vmul.f32 %v52, %v73
    %v75 = vsel %vm53, %v74, 0.0
    %76 = vadd.xlane.f32.xlu0 %v75
    %v77 = vpop.xlane.xlu0 %76
    %v78 = vsub.f32 %v65, %v77
    %s79 = sadd.s32 0, 0
    %s80 = smul.u32 %s79, 8
    %v81 = vlaneseq
    %v82 = vshrl.u32 %v81, 7
    %v83 = vstv %s80
    %v84 = vadd.s32 %v83, %v82
    %vm85 = vcmp.lt.s32.totalorder %v84, 8
    %v86 = vsel %vm85, %v78, 0.0
    %v87 = vld [vmem:[#allocation2] sm:$0x1]
    %vm88 = vcmask 7168
    %v89 = vsel %vm88, %v86, 0.0
    %90 = vadd.xlane.f32.xlu0 %v89
    %v91 = vpop.xlane.xlu0 %90
    %v92 = vrot.slane %v91, 4
    %v93 = vadd.f32 %v91, %v92
    %v94 = vrot.slane %v93, 2
    %v95 = vadd.f32 %v93, %v94
    %v96 = vrot.slane %v95, 1
    %v97 = vadd.f32 %v95, %v96
    %s98 = vtos %v97
    %v99 = vstv %s98
    %v100 = vmul.f32 %v99, 0.125
    %v101 = vadd.f32 %v87, %v100
    %vm102 = vcmask 0
    %103 = vst.msk [vmem:[#allocation2] sm:$0x1] %vm102, %v101
    // Predicated region
    $region14: #{tpu_custom_call.1} parent=1 // pred_check
      _
    $region15: #{tpu_custom_call.1} parent=1 // pred_check_branch
      %105 = sbr.rel (0) target = $region17
    $region16: #{tpu_custom_call.1} parent=1 // pred_region
      %s107 = ssub.s32 16, 16
      %108 = vsyncadd [#allocation3], %s107
      %s110 = sshll.u32 [#allocation2], 4
      %s111 = int_to_ptr.vmem [resolvable:$true] %s110
      %113 = dma.vmem_to_hbm [thread:$0]  %s111, 16, %s2, [#allocation3]
    $region17: #{tpu_custom_call.1} parent=1 // pred_fallthru
      _
    // Predicated region
    $region18: #{tpu_custom_call.1} parent=1 // pred_check
      _
    $region19: #{tpu_custom_call.1} parent=1 // pred_check_branch
      %115 = sbr.rel (0) target = $region21
    $region20: #{tpu_custom_call.1} parent=1 // pred_region
      %116 = dma.done [#allocation3], 16
    $region21: #{tpu_custom_call.1} parent=1 // pred_fallthru
      _
    %117 = vsyncpa [#allocation3], 1

</llo_original>
